<compile_context>
chip_gen: v5e
topology: v5e:2x2
jax: 0.10.0
libtpu: 0.0.40
codegen_flags: <defaults>
</compile_context>

<pallas_src>
import functools

import jax
import jax.numpy as jnp
from jax.experimental import pallas as pl
from jax.experimental.pallas import tpu as pltpu


def _round_up(n, m):
    return ((n + m - 1) // m) * m


def _vmem_limit_bytes(tile_m, c_pad, s_pad):
    """Rough VMEM budget: double-buffered I/O tiles + resident weights +
    per-tile intermediates, 2x headroom, clamped to v7x's 64 MiB VMEM."""
    f32, bf16 = 4, 2
    io = 2 * tile_m * (2 * c_pad + c_pad + s_pad) * f32          # x, halo, out, skip (double-buffered)
    wts = 2 * (2 * c_pad * 2 * c_pad + c_pad * (s_pad + c_pad)) * f32 \
        + 2 * (2 * c_pad + s_pad + c_pad) * f32                  # weights (f32 upper bound) + biases
    interm = tile_m * (2 * c_pad + 3 * c_pad + s_pad) * f32      # pre, gated, fused, shifted
    est = 2 * (io + wts + interm)
    return int(min(64 * 1024 * 1024, max(16 * 1024 * 1024, est)))


def _wavenet_block_kernel(x_ref, x_halo_ref, w_k0_ref, w_k1_ref, b_dcc_ref,
                          w_1x1_ref, b_1x1_ref, out_ref, skip_ref,
                          *, dilation, seq_len):
    tile_m, c_pad = x_ref.shape
    s_pad = skip_ref.shape[1]
    j = pl.program_id(0)
    mm_dtype = w_k1_ref.dtype

    x = x_ref[...]                                   # (tile_m, C_pad) f32, current rows
    x_halo = x_halo_ref[...]                         # rows of block j-1 (block 0 when j == 0)

    # shifted[r] = x_flat[j*tile_m + r - dilation]
    if dilation >= tile_m:                           # static; wrapper guarantees dilation <= tile_m
        shifted = x_halo
    else:
        shifted = jnp.concatenate(
            [x_halo[tile_m - dilation:, :], x[:tile_m - dilation, :]], axis=0)
    # Causal zero padding: rows whose time index within their own sequence is
    # < dilation look "before t=0" and must read zeros.  This also neutralizes
    # the bogus halo at j == 0 and at batch boundaries inside/between tiles.
    row = j * tile_m + jax.lax.broadcasted_iota(jnp.int32, (tile_m, 1), 0)
    shifted = jnp.where(row % seq_len < dilation, 0.0, shifted)

    # Dilated causal conv (kernel_size=2): two MXU matmuls, f32 accumulation.
    pre = (jnp.dot(x.astype(mm_dtype), w_k1_ref[...],
                   preferred_element_type=jnp.float32)
           + jnp.dot(shifted.astype(mm_dtype), w_k0_ref[...],
                     preferred_element_type=jnp.float32)
           + b_dcc_ref[...])                         # (tile_m, 2*C_pad) f32

    # Gated activation (padded channels stay exactly zero: zero weights/bias).
    gated = jnp.tanh(pre[:, :c_pad]) * jax.nn.sigmoid(pre[:, c_pad:])

    # Fused 1x1 skip conv + 1x1 residual conv as a single matmul.
    fused = (jnp.dot(gated.astype(mm_dtype), w_1x1_ref[...],
                     preferred_element_type=jnp.float32)
             + b_1x1_ref[...])                       # (tile_m, S_pad + C_pad) f32

    skip_ref[...] = fused[:, :s_pad]
    out_ref[...] = fused[:, s_pad:] + x              # residual add in f32
    # TODO(synk): dropout is the identity in eval mode; training-mode dropout
    # (stateful RNG masking) is not implemented.


def prepare_params(raw, block_channels, skip_channels):
    """Convert PyTorch-shaped Conv1d weights into padded, matmul-form kernel
    params (channels padded to multiples of 128, 1x1 convs fused).  Do this
    once per model, outside the per-step path."""
    C, S = block_channels, skip_channels
    c_pad, s_pad = _round_up(C, 128), _round_up(S, 128)

    # Dilated conv taps: W[:, :, 0] acts on x[t-d], W[:, :, 1] acts on x[t].
    # Act out-channels -> columns [0, C), gate out-channels -> [c_pad, c_pad+C).
    w_k0 = jnp.zeros((c_pad, 2 * c_pad), jnp.float32)
    w_k1 = jnp.zeros((c_pad, 2 * c_pad), jnp.float32)
    b_dcc = jnp.zeros((1, 2 * c_pad), jnp.float32)
    w_k0 = w_k0.at[:C, :C].set(raw["dcc_w"][:C, :, 0].T)
    w_k0 = w_k0.at[:C, c_pad:c_pad + C].set(raw["dcc_w"][C:, :, 0].T)
    w_k1 = w_k1.at[:C, :C].set(raw["dcc_w"][:C, :, 1].T)
    w_k1 = w_k1.at[:C, c_pad:c_pad + C].set(raw["dcc_w"][C:, :, 1].T)
    b_dcc = b_dcc.at[0, :C].set(raw["dcc_b"][:C])
    b_dcc = b_dcc.at[0, c_pad:c_pad + C].set(raw["dcc_b"][C:])

    # Fused 1x1 convs: [ skip | residual ]
    w_1x1 = jnp.zeros((c_pad, s_pad + c_pad), jnp.float32)
    b_1x1 = jnp.zeros((1, s_pad + c_pad), jnp.float32)
    w_1x1 = w_1x1.at[:C, :S].set(raw["skip_w"][:, :, 0].T)
    w_1x1 = w_1x1.at[:C, s_pad:s_pad + C].set(raw["res_w"][:, :, 0].T)
    b_1x1 = b_1x1.at[0, :S].set(raw["skip_b"])
    b_1x1 = b_1x1.at[0, s_pad:s_pad + C].set(raw["res_b"])

    return {"block_channels": C, "skip_channels": S, "c_pad": c_pad, "s_pad": s_pad,
            "w_k0": w_k0, "w_k1": w_k1, "b_dcc": b_dcc, "w_1x1": w_1x1, "b_1x1": b_1x1}


def wavenet_block_nwc(x_btc, params, dilation, *, tile_m=512,
                      matmul_dtype=jnp.bfloat16):
    """Channels-last WaveNetBlock forward.

    x_btc: (B, T, C) float32.  Returns (out (B, T, C), skip (B, T, S)).
    Keep activations in this layout across a stack of blocks; only convert
    to/from PyTorch NCW at the network boundary (see `wavenet_block`)."""
    B, T, C = x_btc.shape
    assert C == params["block_channels"]
    assert dilation >= 1
    S = params["skip_channels"]
    c_pad, s_pad = params["c_pad"], params["s_pad"]

    M = B * T
    tile_m = min(tile_m, _round_up(M, 8))
    tile_m = max(tile_m, _round_up(dilation, 8))     # halo is exactly one block deep
    m_pad = _round_up(M, tile_m)
    grid = (m_pad // tile_m,)

    x2 = x_btc.reshape(M, C).astype(jnp.float32)
    x2 = jnp.pad(x2, ((0, m_pad - M), (0, c_pad - C)))

    w_k0 = params["w_k0"].astype(matmul_dtype)
    w_k1 = params["w_k1"].astype(matmul_dtype)
    w_1x1 = params["w_1x1"].astype(matmul_dtype)

    kernel = functools.partial(_wavenet_block_kernel, dilation=dilation, seq_len=T)

    def resident(shape):
        return pl.BlockSpec(shape, lambda j: (0, 0))

    out_p, skip_p = pl.pallas_call(
        kernel,
        out_shape=(jax.ShapeDtypeStruct((m_pad, c_pad), jnp.float32),
                   jax.ShapeDtypeStruct((m_pad, s_pad), jnp.float32)),
        grid=grid,
        in_specs=[
            pl.BlockSpec((tile_m, c_pad), lambda j: (j, 0)),                      # x (current block)
            pl.BlockSpec((tile_m, c_pad), lambda j: (jnp.maximum(j - 1, 0), 0)),  # x halo (prev block)
            resident((c_pad, 2 * c_pad)),          # w_k0
            resident((c_pad, 2 * c_pad)),          # w_k1
            resident((1, 2 * c_pad)),              # b_dcc
            resident((c_pad, s_pad + c_pad)),      # fused 1x1 weights
            resident((1, s_pad + c_pad)),          # fused 1x1 bias
        ],
        out_specs=(pl.BlockSpec((tile_m, c_pad), lambda j: (j, 0)),
                   pl.BlockSpec((tile_m, s_pad), lambda j: (j, 0))),
        compiler_params=pltpu.CompilerParams(
            dimension_semantics=("parallel",),
            vmem_limit_bytes=_vmem_limit_bytes(tile_m, c_pad, s_pad)),
    )(x2, x2, w_k0, w_k1, params["b_dcc"], w_1x1, params["b_1x1"])

    out = out_p[:M, :C].reshape(B, T, C)
    skip = skip_p[:M, :S].reshape(B, T, S)
    return out, skip


def wavenet_block(x_nct, params, dilation, *, tile_m=512, matmul_dtype=jnp.bfloat16):
    """PyTorch NCW-layout wrapper.  For a full WaveNet stack, call
    `wavenet_block_nwc` directly and transpose only at the network boundary."""
    x_btc = jnp.transpose(x_nct, (0, 2, 1))
    out_btc, skip_bts = wavenet_block_nwc(x_btc, params, dilation,
                                          tile_m=tile_m, matmul_dtype=matmul_dtype)
    return jnp.transpose(out_btc, (0, 2, 1)), jnp.transpose(skip_bts, (0, 2, 1))


def init_raw_params(key, block_channels, skip_channels):
    """Deterministic params matching the PyTorch module's parameter shapes."""
    C, S = block_channels, skip_channels
    ks = jax.random.split(key, 6)
    return {
        "dcc_w": jax.random.normal(ks[0], (2 * C, C, 2), jnp.float32) * 0.3,  # Conv1d(C, 2C, k=2)
        "dcc_b": jax.random.normal(ks[1], (2 * C,), jnp.float32) * 0.1,
        "skip_w": jax.random.normal(ks[2], (S, C, 1), jnp.float32) * 0.3,     # Conv1d(C, S, 1)
        "skip_b": jax.random.normal(ks[3], (S,), jnp.float32) * 0.1,
        "res_w": jax.random.normal(ks[4], (C, C, 1), jnp.float32) * 0.3,      # Conv1d(C, C, 1)
        "res_b": jax.random.normal(ks[5], (C,), jnp.float32) * 0.1,
    }


def ref_wavenet_block(x_nct, raw, dilation, matmul_dtype=jnp.float32):
    """Pure-JAX reference of the PyTorch forward (eval mode).
    matmul_dtype=bf16 mirrors the kernel's bf16-in / f32-accumulate MXU math;
    matmul_dtype=f32 is the exact PyTorch-semantics baseline."""
    B, C, T = x_nct.shape
    xl = jnp.transpose(x_nct, (0, 2, 1)).astype(jnp.float32)   # (B, T, C)
    x_shift = jnp.concatenate(
        [jnp.zeros((B, dilation, C), xl.dtype), xl[:, :T - dilation, :]], axis=1)

    w0 = raw["dcc_w"][:, :, 0].T     # (C, 2C), acts on x[t - d]
    w1 = raw["dcc_w"][:, :, 1].T     # (C, 2C), acts on x[t]
    w_skip = raw["skip_w"][:, :, 0].T
    w_res = raw["res_w"][:, :, 0].T

    def mm(a, b):
        return jnp.dot(a.astype(matmul_dtype), b.astype(matmul_dtype),
                       preferred_element_type=jnp.float32)

    pre = mm(xl, w1) + mm(x_shift, w0) + raw["dcc_b"]
    gated = jnp.tanh(pre[..., :C]) * jax.nn.sigmoid(pre[..., C:])
    skip = mm(gated, w_skip) + raw["skip_b"]
    out = mm(gated, w_res) + raw["res_b"] + xl
    return jnp.transpose(out, (0, 2, 1)), jnp.transpose(skip, (0, 2, 1))


if __name__ == "__main__":
    B, C, S, T = 2, 4, 8, 16          # batch, block_channels, skip_channels, seq len
    dilation = 2

    key = jax.random.PRNGKey(0)
    k_x, k_p = jax.random.split(key)
    x = jax.random.normal(k_x, (B, C, T), jnp.float32)   # PyTorch NCW layout
    raw = init_raw_params(k_p, C, S)
    params = prepare_params(raw, C, S)

    # --- exact-arithmetic check (f32 matmul path) --------------------------------
    out32, skip32 = wavenet_block(x, params, dilation, matmul_dtype=jnp.float32)
    out32 = jax.block_until_ready(out32)
    skip32 = jax.block_until_ready(skip32)
    assert out32.shape == (B, C, T) and skip32.shape == (B, S, T)
    out_ref, skip_ref = ref_wavenet_block(x, raw, dilation, matmul_dtype=jnp.float32)
    assert jnp.allclose(out32, out_ref, atol=1e-5, rtol=1e-5)
    assert jnp.allclose(skip32, skip_ref, atol=1e-5, rtol=1e-5)

    # --- default fast path: bf16 matmul operands, f32 accumulation ---------------
    out, skip = wavenet_block(x, params, dilation)        # matmul_dtype=bf16
    out = jax.block_until_ready(out)
    skip = jax.block_until_ready(skip)
    assert out.shape == (B, C, T) and skip.shape == (B, S, T)
    out_bf, skip_bf = ref_wavenet_block(x, raw, dilation, matmul_dtype=jnp.bfloat16)
    assert jnp.allclose(out, out_bf, atol=2e-2, rtol=2e-2)
    assert jnp.allclose(skip, skip_bf, atol=2e-2, rtol=2e-2)
    # sanity vs. pure-f32 semantics (difference is bf16 operand quantization only)
    assert jnp.allclose(out, out_ref, atol=1e-1, rtol=1e-1)
    assert jnp.allclose(skip, skip_ref, atol=1e-1, rtol=1e-1)

    print("KERNEL_OK")
</pallas_src>

<mosaic_0001>
module attributes {stable_mosaic.version = 11 : i64} {
  func.func @_wavenet_block_kernel(%arg0: i32, %arg1: memref<32x128xf32, #tpu.memory_space<vmem>>, %arg2: memref<32x128xf32, #tpu.memory_space<vmem>>, %arg3: memref<128x256xf32, #tpu.memory_space<vmem>>, %arg4: memref<128x256xf32, #tpu.memory_space<vmem>>, %arg5: memref<1x256xf32, #tpu.memory_space<vmem>>, %arg6: memref<128x256xf32, #tpu.memory_space<vmem>>, %arg7: memref<1x256xf32, #tpu.memory_space<vmem>>, %arg8: memref<32x128xf32, #tpu.memory_space<vmem>>, %arg9: memref<32x128xf32, #tpu.memory_space<vmem>>) attributes {dimension_semantics = [#tpu.dimension_semantics<parallel>], iteration_bounds = array<i64: 1>, scalar_prefetch = 0 : i64, scratch_operands = 0 : i64, tpu.core_type = #tpu.core_type<tc>, window_params = [{transform_indices = @transform_0, window_bounds = array<i64: 32, 128>}, {transform_indices = @transform_1, window_bounds = array<i64: 32, 128>}, {pipeline_mode = #tpu.pipeline_mode<synchronous>, transform_indices = @transform_2, window_bounds = array<i64: 128, 256>}, {pipeline_mode = #tpu.pipeline_mode<synchronous>, transform_indices = @transform_3, window_bounds = array<i64: 128, 256>}, {pipeline_mode = #tpu.pipeline_mode<synchronous>, transform_indices = @transform_4, window_bounds = array<i64: 1, 256>}, {pipeline_mode = #tpu.pipeline_mode<synchronous>, transform_indices = @transform_5, window_bounds = array<i64: 128, 256>}, {pipeline_mode = #tpu.pipeline_mode<synchronous>, transform_indices = @transform_6, window_bounds = array<i64: 1, 256>}, {transform_indices = @transform_7, window_bounds = array<i64: 32, 128>}, {transform_indices = @transform_8, window_bounds = array<i64: 32, 128>}]} {
    %c0 = arith.constant 0 : index
    %c0_0 = arith.constant 0 : index
    %0 = vector.load %arg1[%c0, %c0_0] : memref<32x128xf32, #tpu.memory_space<vmem>>, vector<32x128xf32>
    %c0_1 = arith.constant 0 : index
    %c0_2 = arith.constant 0 : index
    %1 = vector.load %arg2[%c0_1, %c0_2] : memref<32x128xf32, #tpu.memory_space<vmem>>, vector<32x128xf32>
    %2 = vector.extract_strided_slice %1 {offsets = [30, 0], sizes = [2, 128], strides = [1, 1]} : vector<32x128xf32> to vector<2x128xf32>
    %3 = vector.extract_strided_slice %0 {offsets = [0, 0], sizes = [30, 128], strides = [1, 1]} : vector<32x128xf32> to vector<30x128xf32>
    %4 = tpu.concatenate %2, %3 in 0 : vector<2x128xf32>, vector<30x128xf32> -> vector<32x128xf32>
    %c32_i32 = arith.constant 32 : i32
    %5 = arith.muli %arg0, %c32_i32 : i32
    %6 = tpu.iota {dimensions = array<i32: 0>} : vector<32x1xi32>
    %7 = vector.broadcast %5 : i32 to vector<32x1xi32>
    %8 = arith.addi %7, %6 : vector<32x1xi32>
    %c16_i32 = arith.constant 16 : i32
    %c0_i32 = arith.constant 0 : i32
    %9 = arith.cmpi eq, %c16_i32, %c0_i32 : i32
    %c1_i32 = arith.constant 1 : i32
    %10 = arith.select %9, %c1_i32, %c16_i32 : i32
    %11 = vector.broadcast %10 : i32 to vector<32x1xi32>
    %12 = arith.remsi %8, %11 : vector<32x1xi32>
    %c0_i32_3 = arith.constant 0 : i32
    %13 = vector.broadcast %c0_i32_3 : i32 to vector<32x1xi32>
    %14 = arith.cmpi ne, %12, %13 : vector<32x1xi32>
    %c0_i32_4 = arith.constant 0 : i32
    %15 = vector.broadcast %c0_i32_4 : i32 to vector<32x1xi32>
    %16 = arith.cmpi slt, %12, %15 : vector<32x1xi32>
    %c0_i32_5 = arith.constant 0 : i32
    %17 = arith.cmpi slt, %10, %c0_i32_5 : i32
    %18 = vector.broadcast %17 : i1 to vector<32x1xi1>
    %19 = vector.broadcast %18 : vector<32x1xi1> to vector<32x1xi1>
    %20 = arith.xori %16, %19 : vector<32x1xi1>
    %21 = arith.andi %20, %14 : vector<32x1xi1>
    %22 = vector.broadcast %10 : i32 to vector<32x1xi32>
    %23 = arith.addi %12, %22 : vector<32x1xi32>
    %24 = arith.select %21, %23, %12 : vector<32x1xi1>, vector<32x1xi32>
    %c2_i32 = arith.constant 2 : i32
    %25 = vector.broadcast %c2_i32 : i32 to vector<32x1xi32>
    %26 = arith.cmpi slt, %24, %25 : vector<32x1xi32>
    %cst = arith.constant 0.000000e+00 : f32
    %27 = vector.shape_cast %26 : vector<32x1xi1> to vector<32x1xi1>
    %28 = vector.broadcast %27 : vector<32x1xi1> to vector<32x128xi1>
    %29 = vector.broadcast %cst : f32 to vector<32x128xf32>
    %30 = arith.select %28, %29, %4 : vector<32x128xi1>, vector<32x128xf32>
    %c0_6 = arith.constant 0 : index
    %c0_7 = arith.constant 0 : index
    %31 = vector.load %arg4[%c0_6, %c0_7] : memref<128x256xf32, #tpu.memory_space<vmem>>, vector<128x256xf32>
    %cst_8 = arith.constant dense<0.000000e+00> : vector<32x256xf32>
    %32 = tpu.matmul %0, %31, %cst_8 {dimension_numbers = #tpu.dot_dimension_numbers<[1], [0], [0], [1], [0, 0, 1, 1], [], []>} : vector<32x128xf32>, vector<128x256xf32>, vector<32x256xf32> -> vector<32x256xf32>
    %c0_9 = arith.constant 0 : index
    %c0_10 = arith.constant 0 : index
    %33 = vector.load %arg3[%c0_9, %c0_10] : memref<128x256xf32, #tpu.memory_space<vmem>>, vector<128x256xf32>
    %cst_11 = arith.constant dense<0.000000e+00> : vector<32x256xf32>
    %34 = tpu.matmul %30, %33, %cst_11 {dimension_numbers = #tpu.dot_dimension_numbers<[1], [0], [0], [1], [0, 0, 1, 1], [], []>} : vector<32x128xf32>, vector<128x256xf32>, vector<32x256xf32> -> vector<32x256xf32>
    %35 = arith.addf %32, %34 : vector<32x256xf32>
    %c0_12 = arith.constant 0 : index
    %c0_13 = arith.constant 0 : index
    %36 = vector.load %arg5[%c0_12, %c0_13] : memref<1x256xf32, #tpu.memory_space<vmem>>, vector<1x256xf32>
    %37 = vector.broadcast %36 : vector<1x256xf32> to vector<32x256xf32>
    %38 = arith.addf %35, %37 : vector<32x256xf32>
    %39 = vector.extract_strided_slice %38 {offsets = [0, 0], sizes = [32, 128], strides = [1, 1]} : vector<32x256xf32> to vector<32x128xf32>
    %40 = math.tanh %39 : vector<32x128xf32>
    %41 = vector.extract_strided_slice %38 {offsets = [0, 128], sizes = [32, 128], strides = [1, 1]} : vector<32x256xf32> to vector<32x128xf32>
    %42 = arith.negf %41 : vector<32x128xf32>
    %43 = math.exp %42 : vector<32x128xf32>
    %cst_14 = arith.constant 1.000000e+00 : f32
    %44 = vector.broadcast %cst_14 : f32 to vector<32x128xf32>
    %45 = arith.addf %44, %43 : vector<32x128xf32>
    %46 = arith.divf %44, %45 : vector<32x128xf32>
    %47 = arith.mulf %40, %46 : vector<32x128xf32>
    %c0_15 = arith.constant 0 : index
    %c0_16 = arith.constant 0 : index
    %48 = vector.load %arg6[%c0_15, %c0_16] : memref<128x256xf32, #tpu.memory_space<vmem>>, vector<128x256xf32>
    %cst_17 = arith.constant dense<0.000000e+00> : vector<32x256xf32>
    %49 = tpu.matmul %47, %48, %cst_17 {dimension_numbers = #tpu.dot_dimension_numbers<[1], [0], [0], [1], [0, 0, 1, 1], [], []>} : vector<32x128xf32>, vector<128x256xf32>, vector<32x256xf32> -> vector<32x256xf32>
    %c0_18 = arith.constant 0 : index
    %c0_19 = arith.constant 0 : index
    %50 = vector.load %arg7[%c0_18, %c0_19] : memref<1x256xf32, #tpu.memory_space<vmem>>, vector<1x256xf32>
    %51 = vector.broadcast %50 : vector<1x256xf32> to vector<32x256xf32>
    %52 = arith.addf %49, %51 : vector<32x256xf32>
    %53 = vector.extract_strided_slice %52 {offsets = [0, 0], sizes = [32, 128], strides = [1, 1]} : vector<32x256xf32> to vector<32x128xf32>
    %c0_20 = arith.constant 0 : index
    %c0_21 = arith.constant 0 : index
    %54 = vector.load %arg9[%c0_20, %c0_21] : memref<32x128xf32, #tpu.memory_space<vmem>>, vector<32x128xf32>
    tpu.vector_store %arg9[%c0_20, %c0_21], %53 {strides = array<i32>} : memref<32x128xf32, #tpu.memory_space<vmem>>, vector<32x128xf32>,
    %55 = vector.extract_strided_slice %52 {offsets = [0, 128], sizes = [32, 128], strides = [1, 1]} : vector<32x256xf32> to vector<32x128xf32>
    %56 = arith.addf %55, %0 : vector<32x128xf32>
    %c0_22 = arith.constant 0 : index
    %c0_23 = arith.constant 0 : index
    %57 = vector.load %arg8[%c0_22, %c0_23] : memref<32x128xf32, #tpu.memory_space<vmem>>, vector<32x128xf32>
    tpu.vector_store %arg8[%c0_22, %c0_23], %56 {strides = array<i32>} : memref<32x128xf32, #tpu.memory_space<vmem>>, vector<32x128xf32>,
    return
  }
  func.func @transform_0(%arg0: i32) -> (i32, i32) {
    %c0_i32 = arith.constant 0 : i32
    %c0_i32_0 = arith.constant 0 : i32
    return %arg0, %c0_i32 : i32, i32
  }
  func.func @transform_1(%arg0: i32) -> (i32, i32) {
    %c1_i32 = arith.constant 1 : i32
    %0 = arith.subi %arg0, %c1_i32 : i32
    %c0_i32 = arith.constant 0 : i32
    %1 = arith.maxsi %0, %c0_i32 : i32
    %c0_i32_0 = arith.constant 0 : i32
    %c0_i32_1 = arith.constant 0 : i32
    return %1, %c0_i32_0 : i32, i32
  }
  func.func @transform_2(%arg0: i32) -> (i32, i32) {
    %c0_i32 = arith.constant 0 : i32
    %c0_i32_0 = arith.constant 0 : i32
    %c0_i32_1 = arith.constant 0 : i32
    return %c0_i32, %c0_i32_0 : i32, i32
  }
  func.func @transform_3(%arg0: i32) -> (i32, i32) {
    %c0_i32 = arith.constant 0 : i32
    %c0_i32_0 = arith.constant 0 : i32
    %c0_i32_1 = arith.constant 0 : i32
    return %c0_i32, %c0_i32_0 : i32, i32
  }
  func.func @transform_4(%arg0: i32) -> (i32, i32) {
    %c0_i32 = arith.constant 0 : i32
    %c0_i32_0 = arith.constant 0 : i32
    %c0_i32_1 = arith.constant 0 : i32
    return %c0_i32, %c0_i32_0 : i32, i32
  }
  func.func @transform_5(%arg0: i32) -> (i32, i32) {
    %c0_i32 = arith.constant 0 : i32
    %c0_i32_0 = arith.constant 0 : i32
    %c0_i32_1 = arith.constant 0 : i32
    return %c0_i32, %c0_i32_0 : i32, i32
  }
  func.func @transform_6(%arg0: i32) -> (i32, i32) {
    %c0_i32 = arith.constant 0 : i32
    %c0_i32_0 = arith.constant 0 : i32
    %c0_i32_1 = arith.constant 0 : i32
    return %c0_i32, %c0_i32_0 : i32, i32
  }
  func.func @transform_7(%arg0: i32) -> (i32, i32) {
    %c0_i32 = arith.constant 0 : i32
    %c0_i32_0 = arith.constant 0 : i32
    return %arg0, %c0_i32 : i32, i32
  }
  func.func @transform_8(%arg0: i32) -> (i32, i32) {
    %c0_i32 = arith.constant 0 : i32
    %c0_i32_0 = arith.constant 0 : i32
    return %arg0, %c0_i32 : i32, i32
  }
}

</mosaic_0001>

<llo_original>
// kernel: tpu_custom_call.1
$region0: #{tpu_custom_call.1}
  #allocation0 [shape = 'u32[]', space=smem, size = 0x4, offset = 0x4, fixed_abs, tag = 'smem constant byte address 0x4 - core index']
  #allocation1 [shape = 'u32[72,128]{1,0:T(1,128)}', space=vmem, size = 0x9000, scoped, tag = 'internal scratch']
  %s0 = inlined_call_operand.hbm [shape: f32[32,128], index: 0, kind: input, shape index: {}]
  %s1 = inlined_call_operand.hbm [shape: f32[32,128], index: 1, kind: input, shape index: {}]
  %s2 = inlined_call_operand.hbm [shape: f32[128,256], index: 2, kind: input, shape index: {}]
  %s3 = inlined_call_operand.hbm [shape: f32[128,256], index: 3, kind: input, shape index: {}]
  %s4 = inlined_call_operand.vmem [shape: f32[1,256], index: 4, kind: input, shape index: {}]
  %s5 = inlined_call_operand.hbm [shape: f32[128,256], index: 5, kind: input, shape index: {}]
  %s6 = inlined_call_operand.vmem [shape: f32[1,256], index: 6, kind: input, shape index: {}]
  %s7 = inlined_call_operand.hbm [shape: f32[32,128], index: 7, kind: output, shape index: {0}]
  %s8 = inlined_call_operand.hbm [shape: f32[32,128], index: 8, kind: output, shape index: {1}]
  %9 = xla_tuple %s7, %s8
  %s10 = sld [smem:[#allocation0]]
  $region66: #{tpu_custom_call.1} parent=0
    _
  %s12 = ssub.s32 1, %s10
  %s13 = scalar_select 0, %s12, %s10
  $region1: #{tpu_custom_call.1} parent=0
    #allocation2 [shape = 'u8[16384]{0}', space=vmem, size = 0x4000, scoped, tag = 'input window, operand 0, single buffered']
    #allocation3 [shape = 's32[1]{0}', space=sflag, size = 0x4, scoped, tag = 'scoped memory for tpu_custom_call.1']
    #allocation4 [shape = 's32[1]{0}', space=sflag, size = 0x4, scoped, tag = 'scoped memory for tpu_custom_call.1']
    #allocation5 [shape = 'u8[16384]{0}', space=vmem, size = 0x4000, scoped, tag = 'input window, operand 1, single buffered']
    #allocation6 [shape = 's32[1]{0}', space=sflag, size = 0x4, scoped, tag = 'scoped memory for tpu_custom_call.1']
    #allocation7 [shape = 'u8[131072]{0}', space=vmem, size = 0x20000, scoped, tag = 'input window, operand 2, single buffered']
    #allocation8 [shape = 'u8[131072]{0}', space=vmem, size = 0x20000, scoped, tag = 'input window, operand 3, single buffered']
    #allocation9 [shape = 's32[1]{0}', space=sflag, size = 0x4, scoped, tag = 'scoped memory for tpu_custom_call.1']
    #allocation10 [shape = 'u8[131072]{0}', space=vmem, size = 0x20000, scoped, tag = 'input window, operand 5, single buffered']
    #allocation11 [shape = 'u8[16384]{0}', space=vmem, size = 0x4000, scoped, tag = 'output window, operand 0, single buffered']
    #allocation12 [shape = 'u8[16384]{0}', space=vmem, size = 0x4000, scoped, tag = 'output window, operand 1, single buffered']
    #allocation13 [shape = 's32[1]{0}', space=sflag, size = 0x4, scoped, tag = 'scoped memory for tpu_custom_call.1']
    %14 = vsyncpa [#allocation3], 0
    %15 = vsyncpa [#allocation6], 0
    %16 = vsyncpa [#allocation9], 0
    %17 = vsyncpa [#allocation4], 0
    %18 = vsyncpa [#allocation13], 0
    // Predicated region
    $region2: #{tpu_custom_call.1} parent=1 // pred_check
      _
    $region3: #{tpu_custom_call.1} parent=1 // pred_check_branch
      %20 = sbr.rel (0) target = $region5
    $region4: #{tpu_custom_call.1} parent=1 // pred_region
      %22 = vsyncadd [#allocation3], 0
      %s23 = sshll.u32 %s0, 4
      %s24 = int_to_ptr.hbm [resolvable:$true] %s23
      %s25 = sshll.u32 [#allocation2], 4
      %s26 = int_to_ptr.vmem [resolvable:$true] %s25
      %31 = dma.hbm_to_vmem [thread:$0]  %s24, 512, %s26, [#allocation3], 128, 128, 8
    $region5: #{tpu_custom_call.1} parent=1 // pred_fallthru
      _
    // Predicated region
    $region6: #{tpu_custom_call.1} parent=1 // pred_check
      _
    $region7: #{tpu_custom_call.1} parent=1 // pred_check_branch
      %33 = sbr.rel (0) target = $region9
    $region8: #{tpu_custom_call.1} parent=1 // pred_region
      %s34 = ssub.s32 0, 1
      %p35 = scmp.gt.s32.totalorder %s34, 0
      %s36 = scalar_select %p35, %s34, 0
      %s37 = smul.u32 4, %s36
      %39 = vsyncadd [#allocation6], 0
      %s40 = smul.addr %s37, 8
      %s41 = scalar_lea.hbm %s1, %s40
      %s42 = sshll.u32 %s41, 4
      %s43 = int_to_ptr.hbm [resolvable:$true] %s42
      %s44 = sshll.u32 [#allocation5], 4
      %s45 = int_to_ptr.vmem [resolvable:$true] %s44
      %50 = dma.hbm_to_vmem [thread:$0]  %s43, 512, %s45, [#allocation6], 128, 128, 8
    $region9: #{tpu_custom_call.1} parent=1 // pred_fallthru
      _
    // Predicated region
    $region10: #{tpu_custom_call.1} parent=1 // pred_check
      _
    $region11: #{tpu_custom_call.1} parent=1 // pred_check_branch
      %52 = sbr.rel (0) target = $region13
    $region12: #{tpu_custom_call.1} parent=1 // pred_region
      %54 = vsyncadd [#allocation6], 0
      %s55 = sshll.u32 %s2, 4
      %s56 = int_to_ptr.hbm [resolvable:$true] %s55
      %s57 = sshll.u32 [#allocation7], 4
      %s58 = int_to_ptr.vmem [resolvable:$true] %s57
      %63 = dma.hbm_to_vmem [thread:$0]  %s56, 4096, %s58, [#allocation6], 256, 256, 16
    $region13: #{tpu_custom_call.1} parent=1 // pred_fallthru
      _
    // Predicated region
    $region14: #{tpu_custom_call.1} parent=1 // pred_check
      _
    $region15: #{tpu_custom_call.1} parent=1 // pred_check_branch
      %65 = sbr.rel (0) target = $region17
    $region16: #{tpu_custom_call.1} parent=1 // pred_region
      %67 = vsyncadd [#allocation9], 0
      %s68 = sshll.u32 %s3, 4
      %s69 = int_to_ptr.hbm [resolvable:$true] %s68
      %s70 = sshll.u32 [#allocation8], 4
      %s71 = int_to_ptr.vmem [resolvable:$true] %s70
      %76 = dma.hbm_to_vmem [thread:$0]  %s69, 4096, %s71, [#allocation9], 256, 256, 16
    $region17: #{tpu_custom_call.1} parent=1 // pred_fallthru
      _
    // Predicated region
    $region18: #{tpu_custom_call.1} parent=1 // pred_check
      _
    $region19: #{tpu_custom_call.1} parent=1 // pred_check_branch
      %78 = sbr.rel (0) target = $region21
    $region20: #{tpu_custom_call.1} parent=1 // pred_region
      _
    $region21: #{tpu_custom_call.1} parent=1 // pred_fallthru
      _
    // Predicated region
    $region22: #{tpu_custom_call.1} parent=1 // pred_check
      _
    $region23: #{tpu_custom_call.1} parent=1 // pred_check_branch
      %80 = sbr.rel (0) target = $region25
    $region24: #{tpu_custom_call.1} parent=1 // pred_region
      %82 = vsyncadd [#allocation9], 0
      %s83 = sshll.u32 %s5, 4
      %s84 = int_to_ptr.hbm [resolvable:$true] %s83
      %s85 = sshll.u32 [#allocation10], 4
      %s86 = int_to_ptr.vmem [resolvable:$true] %s85
      %91 = dma.hbm_to_vmem [thread:$0]  %s84, 4096, %s86, [#allocation9], 256, 256, 16
    $region25: #{tpu_custom_call.1} parent=1 // pred_fallthru
      _
    // Predicated region
    $region26: #{tpu_custom_call.1} parent=1 // pred_check
      _
    $region27: #{tpu_custom_call.1} parent=1 // pred_check_branch
      %93 = sbr.rel (0) target = $region29
    $region28: #{tpu_custom_call.1} parent=1 // pred_region
      _
    $region29: #{tpu_custom_call.1} parent=1 // pred_fallthru
      _
    // Predicated region
    $region30: #{tpu_custom_call.1} parent=1 // pred_check
      _
    $region31: #{tpu_custom_call.1} parent=1 // pred_check_branch
      %95 = sbr.rel (0) target = $region33
    $region32: #{tpu_custom_call.1} parent=1 // pred_region
      %97 = dma.done [#allocation3], 512
    $region33: #{tpu_custom_call.1} parent=1 // pred_fallthru
      _
    // Predicated region
    $region34: #{tpu_custom_call.1} parent=1 // pred_check
      _
    $region35: #{tpu_custom_call.1} parent=1 // pred_check_branch
      %99 = sbr.rel (0) target = $region37
    $region36: #{tpu_custom_call.1} parent=1 // pred_region
      %101 = dma.done [#allocation6], 512
    $region37: #{tpu_custom_call.1} parent=1 // pred_fallthru
      _
    // Predicated region
    $region38: #{tpu_custom_call.1} parent=1 // pred_check
      _
    $region39: #{tpu_custom_call.1} parent=1 // pred_check_branch
      %103 = sbr.rel (0) target = $region41
    $region40: #{tpu_custom_call.1} parent=1 // pred_region
      %105 = dma.done [#allocation6], 4096
    $region41: #{tpu_custom_call.1} parent=1 // pred_fallthru
      _
    // Predicated region
    $region42: #{tpu_custom_call.1} parent=1 // pred_check
      _
    $region43: #{tpu_custom_call.1} parent=1 // pred_check_branch
      %107 = sbr.rel (0) target = $region45
    $region44: #{tpu_custom_call.1} parent=1 // pred_region
      %109 = dma.done [#allocation9], 4096
    $region45: #{tpu_custom_call.1} parent=1 // pred_fallthru
      _
    // Predicated region
    $region46: #{tpu_custom_call.1} parent=1 // pred_check
      _
    $region47: #{tpu_custom_call.1} parent=1 // pred_check_branch
      %111 = sbr.rel (0) target = $region49
    $region48: #{tpu_custom_call.1} parent=1 // pred_region
      %113 = dma.done [#allocation9], 4096
    $region49: #{tpu_custom_call.1} parent=1 // pred_fallthru
      _
    %s114 = ssub.s32 0, 1
    %p115 = scmp.gt.s32.totalorder %s114, 0
    %s116 = scalar_select %p115, %s114, 0
    %s117 = smul.u32 4, %s116
    %v118 = vld [vmem:[#allocation2] sm:$0xff]
    %v119 = vld [vmem:[#allocation2 + $0x8] sm:$0xff]
    %v120 = vld [vmem:[#allocation2 + $0x10] sm:$0xff]
    %v121 = vld [vmem:[#allocation2 + $0x18] sm:$0xff]
    %v122 = vld [vmem:[#allocation5 + $0x18] sm:$0xff]
    %v124 = vrot.slane %v122, 6
    %vm130 = vcmask 1041408
    %v131 = vrot.slane %v118, 6
    %v132 = vrot.slane %v119, 6
    %v133 = vsel %vm130, %v131, %v132
    %v134 = vrot.slane %v120, 6
    %v135 = vsel %vm130, %v132, %v134
    %v136 = vrot.slane %v121, 6
    %v137 = vsel %vm130, %v134, %v136
    %v142 = vsel %vm130, %v124, %v131
    %s143 = smul.u32 0, 32
    %v144 = vlaneseq
    %v145 = vshrl.u32 %v144, 7
    %v146 = vadd.s32 %v145, 8
    %v147 = vadd.s32 %v145, 16
    %v148 = vadd.s32 %v145, 24
    %v149 = vstv %s143
    %v150 = vadd.s32 %v149, %v145
    %v151 = vadd.s32 %v149, %v146
    %v152 = vadd.s32 %v149, %v147
    %v153 = vadd.s32 %v149, %v148
    %vm154 = vcmp.lt.s32.totalorder %v150, 0
    %v155 = vsub.s32 0, %v150
    %v156 = vsel %vm154, %v155, %v150
    %v157 = vshrl.u32 %v156, 4
    %v158 = vand.u32 %v156, 15
    %v159 = vsub.s32 0, %v158
    %v160 = vsel %vm154, %v159, %v158
    %vm161 = vcmp.lt.s32.totalorder %v151, 0
    %v162 = vsub.s32 0, %v151
    %v163 = vsel %vm161, %v162, %v151
    %v164 = vshrl.u32 %v163, 4
    %v165 = vand.u32 %v163, 15
    %v166 = vsub.s32 0, %v165
    %v167 = vsel %vm161, %v166, %v165
    %vm168 = vcmp.lt.s32.totalorder %v152, 0
    %v169 = vsub.s32 0, %v152
    %v170 = vsel %vm168, %v169, %v152
    %v171 = vshrl.u32 %v170, 4
    %v172 = vand.u32 %v170, 15
    %v173 = vsub.s32 0, %v172
    %v174 = vsel %vm168, %v173, %v172
    %vm175 = vcmp.lt.s32.totalorder %v153, 0
    %v176 = vsub.s32 0, %v153
    %v177 = vsel %vm175, %v176, %v153
    %v178 = vshrl.u32 %v177, 4
    %v179 = vand.u32 %v177, 15
    %v180 = vsub.s32 0, %v179
    %v181 = vsel %vm175, %v180, %v179
    %vm182 = vcmp.ne.s32.totalorder %v160, 0
    %vm183 = vcmp.ne.s32.totalorder %v167, 0
    %vm184 = vcmp.ne.s32.totalorder %v174, 0
    %vm185 = vcmp.ne.s32.totalorder %v181, 0
    %vm186 = vcmp.lt.s32.totalorder %v160, 0
    %vm187 = vcmp.lt.s32.totalorder %v167, 0
    %vm188 = vcmp.lt.s32.totalorder %v174, 0
    %vm189 = vcmp.lt.s32.totalorder %v181, 0
    %vm190 = vmand %vm186, %vm182
    %vm191 = vmand %vm187, %vm183
    %vm192 = vmand %vm188, %vm184
    %vm193 = vmand %vm189, %vm185
    %v194 = vadd.s32 %v160, 16
    %v195 = vadd.s32 %v167, 16
    %v196 = vadd.s32 %v174, 16
    %v197 = vadd.s32 %v181, 16
    %v198 = vsel %vm190, %v194, %v160
    %v199 = vsel %vm191, %v195, %v167
    %v200 = vsel %vm192, %v196, %v174
    %v201 = vsel %vm193, %v197, %v181
    %vm202 = vcmp.lt.s32.totalorder %v198, 2
    %vm203 = vcmp.lt.s32.totalorder %v199, 2
    %vm204 = vcmp.lt.s32.totalorder %v200, 2
    %vm205 = vcmp.lt.s32.totalorder %v201, 2
    %v206 = vsel %vm202, 1, 0
    %v207 = vsel %vm203, 1, 0
    %v208 = vsel %vm204, 1, 0
    %v209 = vsel %vm205, 1, 0
    %vm210 = vcmp.eq.s32.totalorder %v206, 1
    %vm211 = vcmp.eq.s32.totalorder %v207, 1
    %vm212 = vcmp.eq.s32.totalorder %v208, 1
    %vm213 = vcmp.eq.s32.totalorder %v209, 1
    %v214 = vsel %vm210, 0.0, %v142
    %v215 = vsel %vm211, 0.0, %v133
    %v216 = vsel %vm212, 0.0, %v135
    %v217 = vsel %vm213, 0.0, %v137
    %v218 = vld [vmem:[#allocation8] sm:$0xff]
    %v219 = vld [vmem:[#allocation8 + $0x8] sm:$0xff]
    %v220 = vld [vmem:[#allocation8 + $0x10] sm:$0xff]
    %v221 = vld [vmem:[#allocation8 + $0x18] sm:$0xff]
    %v222 = vld [vmem:[#allocation8 + $0x20] sm:$0xff]
    %v223 = vld [vmem:[#allocation8 + $0x28] sm:$0xff]
    %v224 = vld [vmem:[#allocation8 + $0x30] sm:$0xff]
    %v225 = vld [vmem:[#allocation8 + $0x38] sm:$0xff]
    %v226 = vld [vmem:[#allocation8 + $0x40] sm:$0xff]
    %v227 = vld [vmem:[#allocation8 + $0x48] sm:$0xff]
    %v228 = vld [vmem:[#allocation8 + $0x50] sm:$0xff]
    %v229 = vld [vmem:[#allocation8 + $0x58] sm:$0xff]
    %v230 = vld [vmem:[#allocation8 + $0x60] sm:$0xff]
    %v231 = vld [vmem:[#allocation8 + $0x68] sm:$0xff]
    %v232 = vld [vmem:[#allocation8 + $0x70] sm:$0xff]
    %v233 = vld [vmem:[#allocation8 + $0x78] sm:$0xff]
    %v234 = vld [vmem:[#allocation8 + $0x80] sm:$0xff]
    %v235 = vld [vmem:[#allocation8 + $0x88] sm:$0xff]
    %v236 = vld [vmem:[#allocation8 + $0x90] sm:$0xff]
    %v237 = vld [vmem:[#allocation8 + $0x98] sm:$0xff]
    %v238 = vld [vmem:[#allocation8 + $0xa0] sm:$0xff]
    %v239 = vld [vmem:[#allocation8 + $0xa8] sm:$0xff]
    %v240 = vld [vmem:[#allocation8 + $0xb0] sm:$0xff]
    %v241 = vld [vmem:[#allocation8 + $0xb8] sm:$0xff]
    %v242 = vld [vmem:[#allocation8 + $0xc0] sm:$0xff]
    %v243 = vld [vmem:[#allocation8 + $0xc8] sm:$0xff]
    %v244 = vld [vmem:[#allocation8 + $0xd0] sm:$0xff]
    %v245 = vld [vmem:[#allocation8 + $0xd8] sm:$0xff]
    %v246 = vld [vmem:[#allocation8 + $0xe0] sm:$0xff]
    %v247 = vld [vmem:[#allocation8 + $0xe8] sm:$0xff]
    %v248 = vld [vmem:[#allocation8 + $0xf0] sm:$0xff]
    %v249 = vld [vmem:[#allocation8 + $0xf8] sm:$0xff]
    %v250 = vld [vmem:[#allocation7] sm:$0xff]
    %v251 = vld [vmem:[#allocation7 + $0x8] sm:$0xff]
    %v252 = vld [vmem:[#allocation7 + $0x10] sm:$0xff]
    %v253 = vld [vmem:[#allocation7 + $0x18] sm:$0xff]
    %v254 = vld [vmem:[#allocation7 + $0x20] sm:$0xff]
    %v255 = vld [vmem:[#allocation7 + $0x28] sm:$0xff]
    %v256 = vld [vmem:[#allocation7 + $0x30] sm:$0xff]
    %v257 = vld [vmem:[#allocation7 + $0x38] sm:$0xff]
    %v258 = vld [vmem:[#allocation7 + $0x40] sm:$0xff]
    %v259 = vld [vmem:[#allocation7 + $0x48] sm:$0xff]
    %v260 = vld [vmem:[#allocation7 + $0x50] sm:$0xff]
    %v261 = vld [vmem:[#allocation7 + $0x58] sm:$0xff]
    %v262 = vld [vmem:[#allocation7 + $0x60] sm:$0xff]
    %v263 = vld [vmem:[#allocation7 + $0x68] sm:$0xff]
    %v264 = vld [vmem:[#allocation7 + $0x70] sm:$0xff]
    %v265 = vld [vmem:[#allocation7 + $0x78] sm:$0xff]
    %v266 = vld [vmem:[#allocation7 + $0x80] sm:$0xff]
    %v267 = vld [vmem:[#allocation7 + $0x88] sm:$0xff]
    %v268 = vld [vmem:[#allocation7 + $0x90] sm:$0xff]
    %v269 = vld [vmem:[#allocation7 + $0x98] sm:$0xff]
    %v270 = vld [vmem:[#allocation7 + $0xa0] sm:$0xff]
    %v271 = vld [vmem:[#allocation7 + $0xa8] sm:$0xff]
    %v272 = vld [vmem:[#allocation7 + $0xb0] sm:$0xff]
    %v273 = vld [vmem:[#allocation7 + $0xb8] sm:$0xff]
    %v274 = vld [vmem:[#allocation7 + $0xc0] sm:$0xff]
    %v275 = vld [vmem:[#allocation7 + $0xc8] sm:$0xff]
    %v276 = vld [vmem:[#allocation7 + $0xd0] sm:$0xff]
    %v277 = vld [vmem:[#allocation7 + $0xd8] sm:$0xff]
    %v278 = vld [vmem:[#allocation7 + $0xe0] sm:$0xff]
    %v279 = vld [vmem:[#allocation7 + $0xe8] sm:$0xff]
    %v280 = vld [vmem:[#allocation7 + $0xf0] sm:$0xff]
    %v281 = vld [vmem:[#allocation7 + $0xf8] sm:$0xff]
    %282 = vmatpush.msra.mxu0 %v280
    %283 = vmatpush.msra.mxu0 %v278
    %284 = vmatpush.msra.mxu0 %v276
    %285 = vmatpush.msra.mxu0 %v274
    %286 = vmatpush.msra.mxu0 %v272
    %287 = vmatpush.msra.mxu0 %v270
    %288 = vmatpush.msra.mxu0 %v268
    %289 = vmatpush.msra.mxu0 %v266
    %290 = vmatpush.msra.mxu0 %v264
    %291 = vmatpush.msra.mxu0 %v262
    %292 = vmatpush.msra.mxu0 %v260
    %293 = vmatpush.msra.mxu0 %v258
    %294 = vmatpush.msra.mxu0 %v256
    %295 = vmatpush.msra.mxu0 %v254
    %296 = vmatpush.msra.mxu0 %v252
    %297 = vmatpush.msra.mxu0 %v250
    %298 = vmatmul.f32.gmra.mxu0 %v214
    %v299 = vpop.f32.mrf.mxu0
    %v300 = vadd.f32 0.0, %v299
    %301 = vmatmul.f32.gmra.mxu0 %v215
    %v302 = vpop.f32.mrf.mxu0
    %v303 = vadd.f32 0.0, %v302
    %304 = vmatmul.f32.gmra.mxu0 %v216
    %v305 = vpop.f32.mrf.mxu0
    %v306 = vadd.f32 0.0, %v305
    %307 = vmatmul.f32.gmra.mxu0 %v217
    %v308 = vpop.f32.mrf.mxu0
    %v309 = vadd.f32 0.0, %v308
    %310 = vdwg.mxu0
    %311 = vmatpush.msra.mxu0 %v281
    %312 = vmatpush.msra.mxu0 %v279
    %313 = vmatpush.msra.mxu0 %v277
    %314 = vmatpush.msra.mxu0 %v275
    %315 = vmatpush.msra.mxu0 %v273
    %316 = vmatpush.msra.mxu0 %v271
    %317 = vmatpush.msra.mxu0 %v269
    %318 = vmatpush.msra.mxu0 %v267
    %319 = vmatpush.msra.mxu0 %v265
    %320 = vmatpush.msra.mxu0 %v263
    %321 = vmatpush.msra.mxu0 %v261
    %322 = vmatpush.msra.mxu0 %v259
    %323 = vmatpush.msra.mxu0 %v257
    %324 = vmatpush.msra.mxu0 %v255
    %325 = vmatpush.msra.mxu0 %v253
    %326 = vmatpush.msra.mxu0 %v251
    %327 = vmatmul.f32.gmra.mxu0 %v214
    %v328 = vpop.f32.mrf.mxu0
    %v329 = vadd.f32 0.0, %v328
    %330 = vmatmul.f32.gmra.mxu0 %v215
    %v331 = vpop.f32.mrf.mxu0
    %v332 = vadd.f32 0.0, %v331
    %333 = vmatmul.f32.gmra.mxu0 %v216
    %v334 = vpop.f32.mrf.mxu0
    %v335 = vadd.f32 0.0, %v334
    %336 = vmatmul.f32.gmra.mxu0 %v217
    %v337 = vpop.f32.mrf.mxu0
    %v338 = vadd.f32 0.0, %v337
    %339 = vdwg.mxu0
    %340 = vmatpush.msra.mxu0 %v248
    %341 = vmatpush.msra.mxu0 %v246
    %342 = vmatpush.msra.mxu0 %v244
    %343 = vmatpush.msra.mxu0 %v242
    %344 = vmatpush.msra.mxu0 %v240
    %345 = vmatpush.msra.mxu0 %v238
    %346 = vmatpush.msra.mxu0 %v236
    %347 = vmatpush.msra.mxu0 %v234
    %348 = vmatpush.msra.mxu0 %v232
    %349 = vmatpush.msra.mxu0 %v230
    %350 = vmatpush.msra.mxu0 %v228
    %351 = vmatpush.msra.mxu0 %v226
    %352 = vmatpush.msra.mxu0 %v224
    %353 = vmatpush.msra.mxu0 %v222
    %354 = vmatpush.msra.mxu0 %v220
    %355 = vmatpush.msra.mxu0 %v218
    %356 = vmatmul.f32.gmra.mxu0 %v118
    %v357 = vpop.f32.mrf.mxu0
    %v358 = vadd.f32 %v300, %v357
    %359 = vmatmul.f32.gmra.mxu0 %v119
    %v360 = vpop.f32.mrf.mxu0
    %v361 = vadd.f32 %v303, %v360
    %362 = vmatmul.f32.gmra.mxu0 %v120
    %v363 = vpop.f32.mrf.mxu0
    %v364 = vadd.f32 %v306, %v363
    %365 = vmatmul.f32.gmra.mxu0 %v121
    %v366 = vpop.f32.mrf.mxu0
    %v367 = vadd.f32 %v309, %v366
    %368 = vdwg.mxu0
    %369 = vmatpush.msra.mxu0 %v249
    %370 = vmatpush.msra.mxu0 %v247
    %371 = vmatpush.msra.mxu0 %v245
    %372 = vmatpush.msra.mxu0 %v243
    %373 = vmatpush.msra.mxu0 %v241
    %374 = vmatpush.msra.mxu0 %v239
    %375 = vmatpush.msra.mxu0 %v237
    %376 = vmatpush.msra.mxu0 %v235
    %377 = vmatpush.msra.mxu0 %v233
    %378 = vmatpush.msra.mxu0 %v231
    %379 = vmatpush.msra.mxu0 %v229
    %380 = vmatpush.msra.mxu0 %v227
    %381 = vmatpush.msra.mxu0 %v225
    %382 = vmatpush.msra.mxu0 %v223
    %383 = vmatpush.msra.mxu0 %v221
    %384 = vmatpush.msra.mxu0 %v219
    %385 = vmatmul.f32.gmra.mxu0 %v118
    %v386 = vpop.f32.mrf.mxu0
    %v387 = vadd.f32 %v329, %v386
    %388 = vmatmul.f32.gmra.mxu0 %v119
    %v389 = vpop.f32.mrf.mxu0
    %v390 = vadd.f32 %v332, %v389
    %391 = vmatmul.f32.gmra.mxu0 %v120
    %v392 = vpop.f32.mrf.mxu0
    %v393 = vadd.f32 %v335, %v392
    %394 = vmatmul.f32.gmra.mxu0 %v121
    %v395 = vpop.f32.mrf.mxu0
    %v396 = vadd.f32 %v338, %v395
    %397 = vdwg.mxu0
    %v398 = vld [vmem:[%s4] sm:$0x3]
    %v400 = vperm.slane %v398, 0
    %v401 = vperm.slane %v398, 1
    %v404 = vadd.f32 %v358, %v400
    %v405 = vadd.f32 %v387, %v401
    %v406 = vadd.f32 %v361, %v400
    %v407 = vadd.f32 %v390, %v401
    %v408 = vadd.f32 %v364, %v400
    %v409 = vadd.f32 %v393, %v401
    %v410 = vadd.f32 %v367, %v400
    %v411 = vadd.f32 %v396, %v401
    %v412 = vtanh.pop %v404
    %v413 = vtanh.pop %v406
    %v414 = vtanh.pop %v408
    %v415 = vtanh.pop %v410
    %v416 = vxor.u32 %v405, 2147483648
    %v417 = vxor.u32 %v407, 2147483648
    %v418 = vxor.u32 %v409, 2147483648
    %v419 = vxor.u32 %v411, 2147483648
    %v420 = vmul.f32 %v416, 1.442695
    %v421 = vpow.pop %v420
    %v422 = vmul.f32 %v417, 1.442695
    %v423 = vpow.pop %v422
    %v424 = vmul.f32 %v418, 1.442695
    %v425 = vpow.pop %v424
    %v426 = vmul.f32 %v419, 1.442695
    %v427 = vpow.pop %v426
    %v428 = vadd.f32 %v421, 1.0
    %v429 = vadd.f32 %v423, 1.0
    %v430 = vadd.f32 %v425, 1.0
    %v431 = vadd.f32 %v427, 1.0
    %v432 = vrcp.pop %v428
    %v433 = vmul.f32 %v428, %v432
    %v434 = vsub.f32 1.0, %v433
    %v435 = vmul.f32 %v432, %v434
    %v436 = vadd.f32 %v432, %v435
    %vm437 = vweird.f32 %v428
    %vm438 = vweird.f32 %v432
    %vm439 = vmor %vm437, %vm438
    %v440 = vsel %vm439, %v432, %v436
    %v441 = vand.u32 2147483647, %v428
    %vm442 = vcmp.eq.f32.partialorder %v441, 8.507059e+37
    %v443 = vand.u32 %v428, 2147483648
    %v444 = vor.u32 1.1754944e-38, %v443
    %v445 = vsel %vm442, %v444, %v440
    %v446 = vmul.f32 1.0, %v445
    %v447 = vrcp.pop %v429
    %v448 = vmul.f32 %v429, %v447
    %v449 = vsub.f32 1.0, %v448
    %v450 = vmul.f32 %v447, %v449
    %v451 = vadd.f32 %v447, %v450
    %vm452 = vweird.f32 %v429
    %vm453 = vweird.f32 %v447
    %vm454 = vmor %vm452, %vm453
    %v455 = vsel %vm454, %v447, %v451
    %v456 = vand.u32 2147483647, %v429
    %vm457 = vcmp.eq.f32.partialorder %v456, 8.507059e+37
    %v458 = vand.u32 %v429, 2147483648
    %v459 = vor.u32 1.1754944e-38, %v458
    %v460 = vsel %vm457, %v459, %v455
    %v461 = vmul.f32 1.0, %v460
    %v462 = vrcp.pop %v430
    %v463 = vmul.f32 %v430, %v462
    %v464 = vsub.f32 1.0, %v463
    %v465 = vmul.f32 %v462, %v464
    %v466 = vadd.f32 %v462, %v465
    %vm467 = vweird.f32 %v430
    %vm468 = vweird.f32 %v462
    %vm469 = vmor %vm467, %vm468
    %v470 = vsel %vm469, %v462, %v466
    %v471 = vand.u32 2147483647, %v430
    %vm472 = vcmp.eq.f32.partialorder %v471, 8.507059e+37
    %v473 = vand.u32 %v430, 2147483648
    %v474 = vor.u32 1.1754944e-38, %v473
    %v475 = vsel %vm472, %v474, %v470
    %v476 = vmul.f32 1.0, %v475
    %v477 = vrcp.pop %v431
    %v478 = vmul.f32 %v431, %v477
    %v479 = vsub.f32 1.0, %v478
    %v480 = vmul.f32 %v477, %v479
    %v481 = vadd.f32 %v477, %v480
    %vm482 = vweird.f32 %v431
    %vm483 = vweird.f32 %v477
    %vm484 = vmor %vm482, %vm483
    %v485 = vsel %vm484, %v477, %v481
    %v486 = vand.u32 2147483647, %v431
    %vm487 = vcmp.eq.f32.partialorder %v486, 8.507059e+37
    %v488 = vand.u32 %v431, 2147483648
    %v489 = vor.u32 1.1754944e-38, %v488
    %v490 = vsel %vm487, %v489, %v485
    %v491 = vmul.f32 1.0, %v490
    %v492 = vmul.f32 %v412, %v446
    %v493 = vmul.f32 %v413, %v461
    %v494 = vmul.f32 %v414, %v476
    %v495 = vmul.f32 %v415, %v491
    %v496 = vld [vmem:[#allocation10] sm:$0xff]
    %v497 = vld [vmem:[#allocation10 + $0x8] sm:$0xff]
    %v498 = vld [vmem:[#allocation10 + $0x10] sm:$0xff]
    %v499 = vld [vmem:[#allocation10 + $0x18] sm:$0xff]
    %v500 = vld [vmem:[#allocation10 + $0x20] sm:$0xff]
    %v501 = vld [vmem:[#allocation10 + $0x28] sm:$0xff]
    %v502 = vld [vmem:[#allocation10 + $0x30] sm:$0xff]
    %v503 = vld [vmem:[#allocation10 + $0x38] sm:$0xff]
    %v504 = vld [vmem:[#allocation10 + $0x40] sm:$0xff]
    %v505 = vld [vmem:[#allocation10 + $0x48] sm:$0xff]
    %v506 = vld [vmem:[#allocation10 + $0x50] sm:$0xff]
    %v507 = vld [vmem:[#allocation10 + $0x58] sm:$0xff]
    %v508 = vld [vmem:[#allocation10 + $0x60] sm:$0xff]
    %v509 = vld [vmem:[#allocation10 + $0x68] sm:$0xff]
    %v510 = vld [vmem:[#allocation10 + $0x70] sm:$0xff]
    %v511 = vld [vmem:[#allocation10 + $0x78] sm:$0xff]
    %v512 = vld [vmem:[#allocation10 + $0x80] sm:$0xff]
    %v513 = vld [vmem:[#allocation10 + $0x88] sm:$0xff]
    %v514 = vld [vmem:[#allocation10 + $0x90] sm:$0xff]
    %v515 = vld [vmem:[#allocation10 + $0x98] sm:$0xff]
    %v516 = vld [vmem:[#allocation10 + $0xa0] sm:$0xff]
    %v517 = vld [vmem:[#allocation10 + $0xa8] sm:$0xff]
    %v518 = vld [vmem:[#allocation10 + $0xb0] sm:$0xff]
    %v519 = vld [vmem:[#allocation10 + $0xb8] sm:$0xff]
    %v520 = vld [vmem:[#allocation10 + $0xc0] sm:$0xff]
    %v521 = vld [vmem:[#allocation10 + $0xc8] sm:$0xff]
    %v522 = vld [vmem:[#allocation10 + $0xd0] sm:$0xff]
    %v523 = vld [vmem:[#allocation10 + $0xd8] sm:$0xff]
    %v524 = vld [vmem:[#allocation10 + $0xe0] sm:$0xff]
    %v525 = vld [vmem:[#allocation10 + $0xe8] sm:$0xff]
    %v526 = vld [vmem:[#allocation10 + $0xf0] sm:$0xff]
    %v527 = vld [vmem:[#allocation10 + $0xf8] sm:$0xff]
    %v528 = vld [vmem:[%s6] sm:$0x3]
    %v530 = vperm.slane %v528, 0
    %v531 = vperm.slane %v528, 1
    %534 = vmatpush.msra.mxu0 %v526
    %535 = vmatpush.msra.mxu0 %v524
    %536 = vmatpush.msra.mxu0 %v522
    %537 = vmatpush.msra.mxu0 %v520
    %538 = vmatpush.msra.mxu0 %v518
    %539 = vmatpush.msra.mxu0 %v516
    %540 = vmatpush.msra.mxu0 %v514
    %541 = vmatpush.msra.mxu0 %v512
    %542 = vmatpush.msra.mxu0 %v510
    %543 = vmatpush.msra.mxu0 %v508
    %544 = vmatpush.msra.mxu0 %v506
    %545 = vmatpush.msra.mxu0 %v504
    %546 = vmatpush.msra.mxu0 %v502
    %547 = vmatpush.msra.mxu0 %v500
    %548 = vmatpush.msra.mxu0 %v498
    %549 = vmatpush.msra.mxu0 %v496
    %550 = vmatmul.f32.gmra.mxu0 %v492
    %v551 = vpop.f32.mrf.mxu0
    %v552 = vadd.f32 %v530, %v551
    %553 = vmatmul.f32.gmra.mxu0 %v493
    %v554 = vpop.f32.mrf.mxu0
    %v555 = vadd.f32 %v530, %v554
    %556 = vmatmul.f32.gmra.mxu0 %v494
    %v557 = vpop.f32.mrf.mxu0
    %v558 = vadd.f32 %v530, %v557
    %559 = vmatmul.f32.gmra.mxu0 %v495
    %v560 = vpop.f32.mrf.mxu0
    %v561 = vadd.f32 %v530, %v560
    %562 = vdwg.mxu0
    %563 = vmatpush.msra.mxu0 %v527
    %564 = vmatpush.msra.mxu0 %v525
    %565 = vmatpush.msra.mxu0 %v523
    %566 = vmatpush.msra.mxu0 %v521
    %567 = vmatpush.msra.mxu0 %v519
    %568 = vmatpush.msra.mxu0 %v517
    %569 = vmatpush.msra.mxu0 %v515
    %570 = vmatpush.msra.mxu0 %v513
    %571 = vmatpush.msra.mxu0 %v511
    %572 = vmatpush.msra.mxu0 %v509
    %573 = vmatpush.msra.mxu0 %v507
    %574 = vmatpush.msra.mxu0 %v505
    %575 = vmatpush.msra.mxu0 %v503
    %576 = vmatpush.msra.mxu0 %v501
    %577 = vmatpush.msra.mxu0 %v499
    %578 = vmatpush.msra.mxu0 %v497
    %579 = vmatmul.f32.gmra.mxu0 %v492
    %v580 = vpop.f32.mrf.mxu0
    %v581 = vadd.f32 %v531, %v580
    %582 = vmatmul.f32.gmra.mxu0 %v493
    %v583 = vpop.f32.mrf.mxu0
    %v584 = vadd.f32 %v531, %v583
    %585 = vmatmul.f32.gmra.mxu0 %v494
    %v586 = vpop.f32.mrf.mxu0
    %v587 = vadd.f32 %v531, %v586
    %588 = vmatmul.f32.gmra.mxu0 %v495
    %v589 = vpop.f32.mrf.mxu0
    %v590 = vadd.f32 %v531, %v589
    %591 = vdwg.mxu0
    %592 = vst [vmem:[#allocation12] sm:$0xff] %v552
    %593 = vst [vmem:[#allocation12 + $0x8] sm:$0xff] %v555
    %594 = vst [vmem:[#allocation12 + $0x10] sm:$0xff] %v558
    %595 = vst [vmem:[#allocation12 + $0x18] sm:$0xff] %v561
    %v596 = vadd.f32 %v581, %v118
    %v597 = vadd.f32 %v584, %v119
    %v598 = vadd.f32 %v587, %v120
    %v599 = vadd.f32 %v590, %v121
    %600 = vst [vmem:[#allocation11] sm:$0xff] %v596
    %601 = vst [vmem:[#allocation11 + $0x8] sm:$0xff] %v597
    %602 = vst [vmem:[#allocation11 + $0x10] sm:$0xff] %v598
    %603 = vst [vmem:[#allocation11 + $0x18] sm:$0xff] %v599
    // Predicated region
    $region50: #{tpu_custom_call.1} parent=1 // pred_check
      _
    $region51: #{tpu_custom_call.1} parent=1 // pred_check_branch
      %605 = sbr.rel (0) target = $region53
    $region52: #{tpu_custom_call.1} parent=1 // pred_region
      %607 = vsyncadd [#allocation4], 0
      %s608 = sshll.u32 [#allocation11], 4
      %s609 = int_to_ptr.vmem [resolvable:$true] %s608
      %s610 = sshll.u32 %s7, 4
      %s611 = int_to_ptr.hbm [resolvable:$true] %s610
      %616 = dma.vmem_to_hbm [thread:$0]  %s609, 512, %s611, [#allocation4], 128, 128, 8
    $region53: #{tpu_custom_call.1} parent=1 // pred_fallthru
      _
    // Predicated region
    $region54: #{tpu_custom_call.1} parent=1 // pred_check
      _
    $region55: #{tpu_custom_call.1} parent=1 // pred_check_branch
      %618 = sbr.rel (0) target = $region57
    $region56: #{tpu_custom_call.1} parent=1 // pred_region
      %620 = vsyncadd [#allocation13], 0
      %s621 = sshll.u32 [#allocation12], 4
      %s622 = int_to_ptr.vmem [resolvable:$true] %s621
      %s623 = sshll.u32 %s8, 4
      %s624 = int_to_ptr.hbm [resolvable:$true] %s623
      %629 = dma.vmem_to_hbm [thread:$0]  %s622, 512, %s624, [#allocation13], 128, 128, 8
    $region57: #{tpu_custom_call.1} parent=1 // pred_fallthru
      _
    // Predicated region
    $region58: #{tpu_custom_call.1} parent=1 // pred_check
      _
    $region59: #{tpu_custom_call.1} parent=1 // pred_check_branch
      %631 = sbr.rel (0) target = $region61
    $region60: #{tpu_custom_call.1} parent=1 // pred_region
      %633 = dma.done [#allocation4], 512
    $region61: #{tpu_custom_call.1} parent=1 // pred_fallthru
      _
    // Predicated region
    $region62: #{tpu_custom_call.1} parent=1 // pred_check
      _
    $region63: #{tpu_custom_call.1} parent=1 // pred_check_branch
      %635 = sbr.rel (0) target = $region65
    $region64: #{tpu_custom_call.1} parent=1 // pred_region
      %637 = dma.done [#allocation13], 512
    $region65: #{tpu_custom_call.1} parent=1 // pred_fallthru
      _
    %638 = vsyncpa [#allocation3], 1
    %639 = vsyncpa [#allocation6], 1
    %640 = vsyncpa [#allocation9], 1
    %641 = vsyncpa [#allocation4], 1
    %642 = vsyncpa [#allocation13], 1

</llo_original>
